<compile_context>
chip_gen: v5e
topology: v5e:2x2
jax: 0.10.0
libtpu: 0.0.40
codegen_flags: <defaults>
</compile_context>

<pallas_src>
import math

import jax
import jax.numpy as jnp
from jax.experimental import pallas as pl
from jax.experimental.pallas import tpu as pltpu


def _feat_kernel(x_ref, w_ref, scale_ref, shift_ref, o_ref):
    # x_ref: (B_blk, T, E); w_ref: (1, E); scale/shift: (1, E); o_ref: (B_blk, E)
    x = x_ref[...].astype(jnp.float32)                       # [Bb, T, E]
    w = w_ref[...].astype(jnp.float32)                       # [1, E]  (broadcasts over Bb, T)

    # Attention scores: VPU multiply + lane (E) reduction -> lane-dense [Bb, T] layout.
    scores = jnp.tanh(jnp.sum(x * w, axis=-1))               # [Bb, T]

    # Softmax over the time axis (last / lane axis).
    m = jnp.max(scores, axis=-1, keepdims=True)              # [Bb, 1]
    e = jnp.exp(scores - m)                                  # [Bb, T]
    a = e / jnp.sum(e, axis=-1, keepdims=True)               # [Bb, T]

    # Weighted sum over time: elementwise multiply + reduction over T.
    pooled = jnp.sum(x * a[:, :, None], axis=1)              # [Bb, E]

    # Pre-folded BatchNorm1d affine (eval mode, running stats).
    o_ref[...] = (pooled * scale_ref[...] + shift_ref[...]).astype(o_ref.dtype)


def _choose_b_blk(B, row_bytes, budget=256 * 1024):
    """Largest divisor of B whose x-block stays under `budget` bytes (keeps vreg pressure low)."""
    cap = max(1, budget // max(row_bytes, 1))
    b_blk = 1
    for d in range(1, B + 1):
        if B % d == 0 and d <= cap:
            b_blk = d
    return b_blk


def feature_extraction_protbert(embedding, weight, gamma, beta, run_mean, run_var, *, eps=1e-5):
    """embedding: [B, T, E] float32/bfloat16 -> [B, E] float32 (eval-mode forward)."""
    B, T, E = embedding.shape

    # Attention weight as a broadcastable row vector.
    w_row = weight.reshape(1, E).astype(jnp.float32)

    # Fold BatchNorm1d (running stats) into a single affine: out = pooled * scale + shift.
    scale_vec = gamma.astype(jnp.float32) * jax.lax.rsqrt(run_var.astype(jnp.float32) + eps)
    shift_vec = beta.astype(jnp.float32) - run_mean.astype(jnp.float32) * scale_vec
    scale = scale_vec.reshape(1, E)
    shift = shift_vec.reshape(1, E)

    row_bytes = T * E * embedding.dtype.itemsize
    b_blk = _choose_b_blk(B, row_bytes)
    grid = (B // b_blk,)

    return pl.pallas_call(
        _feat_kernel,
        out_shape=jax.ShapeDtypeStruct((B, E), jnp.float32),
        grid_spec=pltpu.PrefetchScalarGridSpec(
            num_scalar_prefetch=0,
            grid=grid,
            in_specs=[
                pl.BlockSpec((b_blk, T, E), lambda b: (b, 0, 0)),   # embedding block
                pl.BlockSpec((1, E), lambda b: (0, 0)),             # attention weight (row)
                pl.BlockSpec((1, E), lambda b: (0, 0)),             # folded BN scale
                pl.BlockSpec((1, E), lambda b: (0, 0)),             # folded BN shift
            ],
            out_specs=pl.BlockSpec((b_blk, E), lambda b: (b, 0)),
        ),
        compiler_params=pltpu.CompilerParams(
            dimension_semantics=("parallel",),
        ),
    )(embedding, w_row, scale, shift)


def _reference(embedding, weight, gamma, beta, run_mean, run_var, eps=1e-5):
    x = embedding.astype(jnp.float32)
    scores = jnp.tanh(jnp.einsum("bte,eo->bto", x, weight.astype(jnp.float32)))  # [B, T, 1]
    a = jax.nn.softmax(scores[..., 0], axis=-1)                                   # [B, T]
    pooled = jnp.sum(x * a[..., None], axis=1)                                    # [B, E]
    inv = jax.lax.rsqrt(run_var + eps)
    return (pooled - run_mean) * inv * gamma + beta


if __name__ == "__main__":
    # Small-but-consistent shapes: ProtBert hidden size is fixed at 1024 by the module.
    B, T, E = 2, 16, 1024

    key = jax.random.PRNGKey(0)
    k_emb, k_w, k_b, k_g, k_be, k_m, k_v = jax.random.split(key, 7)

    embedding = jax.random.normal(k_emb, (B, T, E), dtype=jnp.float32)

    # FeedAttention params: weight [E, 1] (kaiming_uniform-like), bias [T, 1] (unused in forward).
    fan_in = E
    gain = math.sqrt(2.0 / (1.0 + 5.0))            # kaiming_uniform_ with a=sqrt(5)
    bound_w = gain * math.sqrt(3.0 / fan_in)
    attn_weight = jax.random.uniform(k_w, (E, 1), minval=-bound_w, maxval=bound_w,
                                     dtype=jnp.float32)
    bound_b = 1.0 / math.sqrt(fan_in)
    attn_bias = jax.random.uniform(k_b, (T, 1), minval=-bound_b, maxval=bound_b,
                                   dtype=jnp.float32)  # defined by module, never used in forward
    del attn_bias

    # Non-trivial BatchNorm1d running stats / affine to exercise the folded-affine path.
    gamma = jax.random.uniform(k_g, (E,), minval=0.5, maxval=1.5, dtype=jnp.float32)
    beta = 0.1 * jax.random.normal(k_be, (E,), dtype=jnp.float32)
    run_mean = 0.1 * jax.random.normal(k_m, (E,), dtype=jnp.float32)
    run_var = jax.random.uniform(k_v, (E,), minval=0.5, maxval=1.5, dtype=jnp.float32)

    out = feature_extraction_protbert(embedding, attn_weight, gamma, beta, run_mean, run_var)
    out = jax.block_until_ready(out)

    ref = _reference(embedding, attn_weight, gamma, beta, run_mean, run_var)
    assert out.shape == (B, E)
    assert jnp.allclose(out, ref, atol=1e-4, rtol=1e-4), "mismatch vs pure-JAX reference"

    print("KERNEL_OK")
</pallas_src>

<mosaic_0001>
module attributes {stable_mosaic.version = 11 : i64} {
  func.func @_feat_kernel(%arg0: i32, %arg1: memref<2x16x1024xf32, #tpu.memory_space<vmem>>, %arg2: memref<1x1024xf32, #tpu.memory_space<vmem>>, %arg3: memref<1x1024xf32, #tpu.memory_space<vmem>>, %arg4: memref<1x1024xf32, #tpu.memory_space<vmem>>, %arg5: memref<2x1024xf32, #tpu.memory_space<vmem>>) attributes {dimension_semantics = [#tpu.dimension_semantics<parallel>], iteration_bounds = array<i64: 1>, scalar_prefetch = 0 : i64, scratch_operands = 0 : i64, tpu.core_type = #tpu.core_type<tc>, window_params = [{transform_indices = @transform_0, window_bounds = array<i64: 2, 16, 1024>}, {pipeline_mode = #tpu.pipeline_mode<synchronous>, transform_indices = @transform_1, window_bounds = array<i64: 1, 1024>}, {pipeline_mode = #tpu.pipeline_mode<synchronous>, transform_indices = @transform_2, window_bounds = array<i64: 1, 1024>}, {pipeline_mode = #tpu.pipeline_mode<synchronous>, transform_indices = @transform_3, window_bounds = array<i64: 1, 1024>}, {transform_indices = @transform_4, window_bounds = array<i64: 2, 1024>}]} {
    %c0 = arith.constant 0 : index
    %c0_0 = arith.constant 0 : index
    %c0_1 = arith.constant 0 : index
    %0 = vector.load %arg1[%c0, %c0_0, %c0_1] : memref<2x16x1024xf32, #tpu.memory_space<vmem>>, vector<2x16x1024xf32>
    %c0_2 = arith.constant 0 : index
    %c0_3 = arith.constant 0 : index
    %1 = vector.load %arg2[%c0_2, %c0_3] : memref<1x1024xf32, #tpu.memory_space<vmem>>, vector<1x1024xf32>
    %2 = vector.shape_cast %1 : vector<1x1024xf32> to vector<1x1x1024xf32>
    %3 = vector.broadcast %2 : vector<1x1x1024xf32> to vector<2x16x1024xf32>
    %4 = arith.mulf %0, %3 : vector<2x16x1024xf32>
    %cst = arith.constant dense<0.000000e+00> : vector<2x16xf32>
    %5 = vector.multi_reduction <add>, %4, %cst [2] : vector<2x16x1024xf32> to vector<2x16xf32>
    %6 = math.tanh %5 : vector<2x16xf32>
    %cst_4 = arith.constant dense<0xFF800000> : vector<2xf32>
    %7 = vector.multi_reduction <maximumf>, %6, %cst_4 [1] : vector<2x16xf32> to vector<2xf32>
    %8 = vector.shape_cast %7 : vector<2xf32> to vector<2x1xf32>
    %9 = vector.broadcast %8 : vector<2x1xf32> to vector<2x16xf32>
    %10 = arith.subf %6, %9 : vector<2x16xf32>
    %11 = math.exp %10 : vector<2x16xf32>
    %cst_5 = arith.constant dense<0.000000e+00> : vector<2xf32>
    %12 = vector.multi_reduction <add>, %11, %cst_5 [1] : vector<2x16xf32> to vector<2xf32>
    %13 = vector.shape_cast %12 : vector<2xf32> to vector<2x1xf32>
    %14 = vector.broadcast %13 : vector<2x1xf32> to vector<2x16xf32>
    %15 = arith.divf %11, %14 : vector<2x16xf32>
    %16 = vector.shape_cast %15 : vector<2x16xf32> to vector<2x16x1xf32>
    %17 = vector.broadcast %16 : vector<2x16x1xf32> to vector<2x16x1024xf32>
    %18 = arith.mulf %0, %17 : vector<2x16x1024xf32>
    %cst_6 = arith.constant dense<0.000000e+00> : vector<2x1024xf32>
    %19 = vector.multi_reduction <add>, %18, %cst_6 [1] : vector<2x16x1024xf32> to vector<2x1024xf32>
    %c0_7 = arith.constant 0 : index
    %c0_8 = arith.constant 0 : index
    %20 = vector.load %arg3[%c0_7, %c0_8] : memref<1x1024xf32, #tpu.memory_space<vmem>>, vector<1x1024xf32>
    %21 = vector.broadcast %20 : vector<1x1024xf32> to vector<2x1024xf32>
    %22 = arith.mulf %19, %21 : vector<2x1024xf32>
    %c0_9 = arith.constant 0 : index
    %c0_10 = arith.constant 0 : index
    %23 = vector.load %arg4[%c0_9, %c0_10] : memref<1x1024xf32, #tpu.memory_space<vmem>>, vector<1x1024xf32>
    %24 = vector.broadcast %23 : vector<1x1024xf32> to vector<2x1024xf32>
    %25 = arith.addf %22, %24 : vector<2x1024xf32>
    %c0_11 = arith.constant 0 : index
    %c0_12 = arith.constant 0 : index
    %26 = vector.load %arg5[%c0_11, %c0_12] : memref<2x1024xf32, #tpu.memory_space<vmem>>, vector<2x1024xf32>
    tpu.vector_store %arg5[%c0_11, %c0_12], %25 {strides = array<i32>} : memref<2x1024xf32, #tpu.memory_space<vmem>>, vector<2x1024xf32>,
    return
  }
  func.func @transform_0(%arg0: i32) -> (i32, i32, i32) {
    %c0_i32 = arith.constant 0 : i32
    %c0_i32_0 = arith.constant 0 : i32
    %c0_i32_1 = arith.constant 0 : i32
    return %arg0, %c0_i32, %c0_i32_0 : i32, i32, i32
  }
  func.func @transform_1(%arg0: i32) -> (i32, i32) {
    %c0_i32 = arith.constant 0 : i32
    %c0_i32_0 = arith.constant 0 : i32
    %c0_i32_1 = arith.constant 0 : i32
    return %c0_i32, %c0_i32_0 : i32, i32
  }
  func.func @transform_2(%arg0: i32) -> (i32, i32) {
    %c0_i32 = arith.constant 0 : i32
    %c0_i32_0 = arith.constant 0 : i32
    %c0_i32_1 = arith.constant 0 : i32
    return %c0_i32, %c0_i32_0 : i32, i32
  }
  func.func @transform_3(%arg0: i32) -> (i32, i32) {
    %c0_i32 = arith.constant 0 : i32
    %c0_i32_0 = arith.constant 0 : i32
    %c0_i32_1 = arith.constant 0 : i32
    return %c0_i32, %c0_i32_0 : i32, i32
  }
  func.func @transform_4(%arg0: i32) -> (i32, i32) {
    %c0_i32 = arith.constant 0 : i32
    %c0_i32_0 = arith.constant 0 : i32
    return %arg0, %c0_i32 : i32, i32
  }
}

</mosaic_0001>

<llo_original>
// kernel: tpu_custom_call.1
$region0: #{tpu_custom_call.1}
  #allocation0 [shape = 'u32[]', space=smem, size = 0x4, offset = 0x4, fixed_abs, tag = 'smem constant byte address 0x4 - core index']
  #allocation1 [shape = 'u32[72,128]{1,0:T(1,128)}', space=vmem, size = 0x9000, scoped, tag = 'internal scratch']
  %s0 = inlined_call_operand.hbm [shape: f32[2,16,1024], index: 0, kind: input, shape index: {}]
  %s1 = inlined_call_operand.hbm [shape: f32[1,1024], index: 1, kind: input, shape index: {}]
  %s2 = inlined_call_operand.hbm [shape: f32[1,1024], index: 2, kind: input, shape index: {}]
  %s3 = inlined_call_operand.hbm [shape: f32[1,1024], index: 3, kind: input, shape index: {}]
  %s4 = inlined_call_operand.hbm [shape: f32[2,1024], index: 4, kind: output, shape index: {}]
  %s5 = sld [smem:[#allocation0]]
  $region42: #{tpu_custom_call.1} parent=0
    _
  %s7 = ssub.s32 1, %s5
  %s8 = scalar_select 0, %s7, %s5
  $region1: #{tpu_custom_call.1} parent=0
    #allocation2 [shape = 'u8[131072]{0}', space=vmem, size = 0x20000, scoped, tag = 'input window, operand 0, single buffered']
    #allocation3 [shape = 's32[1]{0}', space=sflag, size = 0x4, scoped, tag = 'scoped memory for tpu_custom_call.1']
    #allocation4 [shape = 's32[1]{0}', space=sflag, size = 0x4, scoped, tag = 'scoped memory for tpu_custom_call.1']
    #allocation5 [shape = 'u8[4096]{0}', space=vmem, size = 0x1000, scoped, tag = 'input window, operand 1, single buffered']
    #allocation6 [shape = 's32[1]{0}', space=sflag, size = 0x4, scoped, tag = 'scoped memory for tpu_custom_call.1']
    #allocation7 [shape = 'u8[4096]{0}', space=vmem, size = 0x1000, scoped, tag = 'input window, operand 2, single buffered']
    #allocation8 [shape = 'u8[4096]{0}', space=vmem, size = 0x1000, scoped, tag = 'input window, operand 3, single buffered']
    #allocation9 [shape = 's32[1]{0}', space=sflag, size = 0x4, scoped, tag = 'scoped memory for tpu_custom_call.1']
    #allocation10 [shape = 'u8[8192]{0}', space=vmem, size = 0x2000, scoped, tag = 'output window, operand 0, single buffered']
    %9 = vsyncpa [#allocation3], 0
    %10 = vsyncpa [#allocation6], 0
    %11 = vsyncpa [#allocation9], 0
    %12 = vsyncpa [#allocation4], 0
    // Predicated region
    $region2: #{tpu_custom_call.1} parent=1 // pred_check
      _
    $region3: #{tpu_custom_call.1} parent=1 // pred_check_branch
      %14 = sbr.rel (0) target = $region5
    $region4: #{tpu_custom_call.1} parent=1 // pred_region
      %16 = vsyncadd [#allocation3], 0
      %s17 = sshll.u32 %s0, 4
      %s18 = int_to_ptr.hbm [resolvable:$true] %s17
      %s19 = sshll.u32 [#allocation2], 4
      %s20 = int_to_ptr.vmem [resolvable:$true] %s19
      %25 = dma.hbm_to_vmem [thread:$0]  %s18, 4096, %s20, [#allocation3], 1024, 1024, 64
    $region5: #{tpu_custom_call.1} parent=1 // pred_fallthru
      _
    // Predicated region
    $region6: #{tpu_custom_call.1} parent=1 // pred_check
      _
    $region7: #{tpu_custom_call.1} parent=1 // pred_check_branch
      %27 = sbr.rel (0) target = $region9
    $region8: #{tpu_custom_call.1} parent=1 // pred_region
      %29 = vsyncadd [#allocation6], 0
      %s31 = sshll.u32 %s1, 4
      %s32 = int_to_ptr.hbm [resolvable:$true] %s31
      %s33 = sshll.u32 [#allocation5], 4
      %s34 = int_to_ptr.vmem [resolvable:$true] %s33
      %36 = dma.hbm_to_vmem [thread:$0]  %s32, 128, %s34, [#allocation6]
    $region9: #{tpu_custom_call.1} parent=1 // pred_fallthru
      _
    // Predicated region
    $region10: #{tpu_custom_call.1} parent=1 // pred_check
      _
    $region11: #{tpu_custom_call.1} parent=1 // pred_check_branch
      %38 = sbr.rel (0) target = $region13
    $region12: #{tpu_custom_call.1} parent=1 // pred_region
      %40 = vsyncadd [#allocation6], 0
      %s42 = sshll.u32 %s2, 4
      %s43 = int_to_ptr.hbm [resolvable:$true] %s42
      %s44 = sshll.u32 [#allocation7], 4
      %s45 = int_to_ptr.vmem [resolvable:$true] %s44
      %47 = dma.hbm_to_vmem [thread:$0]  %s43, 128, %s45, [#allocation6]
    $region13: #{tpu_custom_call.1} parent=1 // pred_fallthru
      _
    // Predicated region
    $region14: #{tpu_custom_call.1} parent=1 // pred_check
      _
    $region15: #{tpu_custom_call.1} parent=1 // pred_check_branch
      %49 = sbr.rel (0) target = $region17
    $region16: #{tpu_custom_call.1} parent=1 // pred_region
      %51 = vsyncadd [#allocation9], 0
      %s53 = sshll.u32 %s3, 4
      %s54 = int_to_ptr.hbm [resolvable:$true] %s53
      %s55 = sshll.u32 [#allocation8], 4
      %s56 = int_to_ptr.vmem [resolvable:$true] %s55
      %58 = dma.hbm_to_vmem [thread:$0]  %s54, 128, %s56, [#allocation9]
    $region17: #{tpu_custom_call.1} parent=1 // pred_fallthru
      _
    // Predicated region
    $region18: #{tpu_custom_call.1} parent=1 // pred_check
      _
    $region19: #{tpu_custom_call.1} parent=1 // pred_check_branch
      %60 = sbr.rel (0) target = $region21
    $region20: #{tpu_custom_call.1} parent=1 // pred_region
      %62 = dma.done [#allocation3], 4096
    $region21: #{tpu_custom_call.1} parent=1 // pred_fallthru
      _
    // Predicated region
    $region22: #{tpu_custom_call.1} parent=1 // pred_check
      _
    $region23: #{tpu_custom_call.1} parent=1 // pred_check_branch
      %64 = sbr.rel (0) target = $region25
    $region24: #{tpu_custom_call.1} parent=1 // pred_region
      %66 = dma.done [#allocation6], 128
    $region25: #{tpu_custom_call.1} parent=1 // pred_fallthru
      _
    // Predicated region
    $region26: #{tpu_custom_call.1} parent=1 // pred_check
      _
    $region27: #{tpu_custom_call.1} parent=1 // pred_check_branch
      %68 = sbr.rel (0) target = $region29
    $region28: #{tpu_custom_call.1} parent=1 // pred_region
      %70 = dma.done [#allocation6], 128
    $region29: #{tpu_custom_call.1} parent=1 // pred_fallthru
      _
    // Predicated region
    $region30: #{tpu_custom_call.1} parent=1 // pred_check
      _
    $region31: #{tpu_custom_call.1} parent=1 // pred_check_branch
      %72 = sbr.rel (0) target = $region33
    $region32: #{tpu_custom_call.1} parent=1 // pred_region
      %74 = dma.done [#allocation9], 128
    $region33: #{tpu_custom_call.1} parent=1 // pred_fallthru
      _
    %v75 = vld [vmem:[#allocation2] sm:$0xff]
    %v76 = vld [vmem:[#allocation2 + $0x8] sm:$0xff]
    %v77 = vld [vmem:[#allocation2 + $0x10] sm:$0xff]
    %v78 = vld [vmem:[#allocation2 + $0x18] sm:$0xff]
    %v79 = vld [vmem:[#allocation2 + $0x20] sm:$0xff]
    %v80 = vld [vmem:[#allocation2 + $0x28] sm:$0xff]
    %v81 = vld [vmem:[#allocation2 + $0x30] sm:$0xff]
    %v82 = vld [vmem:[#allocation2 + $0x38] sm:$0xff]
    %v83 = vld [vmem:[#allocation2 + $0x40] sm:$0xff]
    %v84 = vld [vmem:[#allocation2 + $0x48] sm:$0xff]
    %v85 = vld [vmem:[#allocation2 + $0x50] sm:$0xff]
    %v86 = vld [vmem:[#allocation2 + $0x58] sm:$0xff]
    %v87 = vld [vmem:[#allocation2 + $0x60] sm:$0xff]
    %v88 = vld [vmem:[#allocation2 + $0x68] sm:$0xff]
    %v89 = vld [vmem:[#allocation2 + $0x70] sm:$0xff]
    %v90 = vld [vmem:[#allocation2 + $0x78] sm:$0xff]
    %v91 = vld [vmem:[#allocation2 + $0x80] sm:$0xff]
    %v92 = vld [vmem:[#allocation2 + $0x88] sm:$0xff]
    %v93 = vld [vmem:[#allocation2 + $0x90] sm:$0xff]
    %v94 = vld [vmem:[#allocation2 + $0x98] sm:$0xff]
    %v95 = vld [vmem:[#allocation2 + $0xa0] sm:$0xff]
    %v96 = vld [vmem:[#allocation2 + $0xa8] sm:$0xff]
    %v97 = vld [vmem:[#allocation2 + $0xb0] sm:$0xff]
    %v98 = vld [vmem:[#allocation2 + $0xb8] sm:$0xff]
    %v99 = vld [vmem:[#allocation2 + $0xc0] sm:$0xff]
    %v100 = vld [vmem:[#allocation2 + $0xc8] sm:$0xff]
    %v101 = vld [vmem:[#allocation2 + $0xd0] sm:$0xff]
    %v102 = vld [vmem:[#allocation2 + $0xd8] sm:$0xff]
    %v103 = vld [vmem:[#allocation2 + $0xe0] sm:$0xff]
    %v104 = vld [vmem:[#allocation2 + $0xe8] sm:$0xff]
    %v105 = vld [vmem:[#allocation2 + $0xf0] sm:$0xff]
    %v106 = vld [vmem:[#allocation2 + $0xf8] sm:$0xff]
    %v107 = vld [vmem:[#allocation5] sm:$0xff]
    %v109 = vperm.slane %v107, 0
    %v110 = vperm.slane %v107, 1
    %v111 = vperm.slane %v107, 2
    %v112 = vperm.slane %v107, 3
    %v113 = vperm.slane %v107, 4
    %v114 = vperm.slane %v107, 5
    %v115 = vperm.slane %v107, 6
    %v116 = vperm.slane %v107, 7
    %v125 = vmul.f32 %v75, %v109
    %v126 = vmul.f32 %v76, %v110
    %v127 = vmul.f32 %v77, %v111
    %v128 = vmul.f32 %v78, %v112
    %v129 = vmul.f32 %v79, %v113
    %v130 = vmul.f32 %v80, %v114
    %v131 = vmul.f32 %v81, %v115
    %v132 = vmul.f32 %v82, %v116
    %v133 = vmul.f32 %v83, %v109
    %v134 = vmul.f32 %v84, %v110
    %v135 = vmul.f32 %v85, %v111
    %v136 = vmul.f32 %v86, %v112
    %v137 = vmul.f32 %v87, %v113
    %v138 = vmul.f32 %v88, %v114
    %v139 = vmul.f32 %v89, %v115
    %v140 = vmul.f32 %v90, %v116
    %v141 = vmul.f32 %v91, %v109
    %v142 = vmul.f32 %v92, %v110
    %v143 = vmul.f32 %v93, %v111
    %v144 = vmul.f32 %v94, %v112
    %v145 = vmul.f32 %v95, %v113
    %v146 = vmul.f32 %v96, %v114
    %v147 = vmul.f32 %v97, %v115
    %v148 = vmul.f32 %v98, %v116
    %v149 = vmul.f32 %v99, %v109
    %v150 = vmul.f32 %v100, %v110
    %v151 = vmul.f32 %v101, %v111
    %v152 = vmul.f32 %v102, %v112
    %v153 = vmul.f32 %v103, %v113
    %v154 = vmul.f32 %v104, %v114
    %v155 = vmul.f32 %v105, %v115
    %v156 = vmul.f32 %v106, %v116
    %v157 = vadd.f32 %v125, %v126
    %v158 = vadd.f32 %v157, %v127
    %v159 = vadd.f32 %v158, %v128
    %v160 = vadd.f32 %v159, %v129
    %v161 = vadd.f32 %v160, %v130
    %v162 = vadd.f32 %v161, %v131
    %v163 = vadd.f32 %v162, %v132
    %164 = vadd.xlane.f32.xlu0 %v163
    %v165 = vpop.xlane.xlu0 %164
    %v166 = vadd.f32 %v133, %v134
    %v167 = vadd.f32 %v166, %v135
    %v168 = vadd.f32 %v167, %v136
    %v169 = vadd.f32 %v168, %v137
    %v170 = vadd.f32 %v169, %v138
    %v171 = vadd.f32 %v170, %v139
    %v172 = vadd.f32 %v171, %v140
    %173 = vadd.xlane.f32.xlu0 %v172
    %v174 = vpop.xlane.xlu0 %173
    %v175 = vadd.f32 %v141, %v142
    %v176 = vadd.f32 %v175, %v143
    %v177 = vadd.f32 %v176, %v144
    %v178 = vadd.f32 %v177, %v145
    %v179 = vadd.f32 %v178, %v146
    %v180 = vadd.f32 %v179, %v147
    %v181 = vadd.f32 %v180, %v148
    %182 = vadd.xlane.f32.xlu0 %v181
    %v183 = vpop.xlane.xlu0 %182
    %v184 = vadd.f32 %v149, %v150
    %v185 = vadd.f32 %v184, %v151
    %v186 = vadd.f32 %v185, %v152
    %v187 = vadd.f32 %v186, %v153
    %v188 = vadd.f32 %v187, %v154
    %v189 = vadd.f32 %v188, %v155
    %v190 = vadd.f32 %v189, %v156
    %191 = vadd.xlane.f32.xlu0 %v190
    %v192 = vpop.xlane.xlu0 %191
    %v193 = vtanh.pop %v165
    %v194 = vtanh.pop %v174
    %v195 = vtanh.pop %v183
    %v196 = vtanh.pop %v192
    %v201 = vlaneseq
    %v202 = vand.u32 %v201, 127
    %v203 = vperm.slane %v193, %v202
    %v204 = vadd.s32 %v202, 4294967288
    %v205 = vperm.slane %v194, %v204
    %vm206 = vcmask 130112
    %v207 = vsel %vm206, %v205, %v203
    %v208 = vperm.slane %v195, %v202
    %v209 = vperm.slane %v196, %v204
    %v210 = vsel %vm206, %v209, %v208
    %vm211 = vcmask 1041409
    %v212 = vsel %vm211, %v210, %v207
    %vm214 = vcmask 123904
    %v215 = vsel %vm214, %v212, -inf
    %216 = vmax.xlane.f32.xlu0 %v215
    %v217 = vpop.xlane.xlu0 %216
    %v219 = vperm.slane %v217, 0
    %v220 = vperm.slane %v217, 1
    %v223 = vsub.f32 %v193, %v219
    %v224 = vsub.f32 %v194, %v219
    %v225 = vsub.f32 %v195, %v220
    %v226 = vsub.f32 %v196, %v220
    %v227 = vmul.f32 %v223, 1.442695
    %v228 = vpow.pop %v227
    %v229 = vmul.f32 %v224, 1.442695
    %v230 = vpow.pop %v229
    %v231 = vmul.f32 %v225, 1.442695
    %v232 = vpow.pop %v231
    %v233 = vmul.f32 %v226, 1.442695
    %v234 = vpow.pop %v233
    %239 = vset.pattern.permute.xlu0 0
    %240 = vperm.xlu0 %239, %v228
    %v241 = vpop.permute.xlu0 %240
    %242 = vset.pattern.permute.xlu0 0
    %243 = vperm.xlu0 %242, %v230
    %v244 = vpop.permute.xlu0 %243
    %245 = vset.pattern.permute.xlu0 0
    %246 = vperm.xlu0 %245, %v232
    %v247 = vpop.permute.xlu0 %246
    %248 = vset.pattern.permute.xlu0 0
    %249 = vperm.xlu0 %248, %v234
    %v250 = vpop.permute.xlu0 %249
    %v251 = vperm.slane %v241, %v202
    %v252 = vperm.slane %v244, %v204
    %v253 = vsel %vm206, %v252, %v251
    %v254 = vperm.slane %v247, %v202
    %v255 = vperm.slane %v250, %v204
    %v256 = vsel %vm206, %v255, %v254
    %v257 = vsel %vm211, %v256, %v253
    %v259 = vsel %vm214, %v257, 0.0
    %260 = vadd.xlane.f32.xlu0 %v259
    %v261 = vpop.xlane.xlu0 %260
    %v263 = vperm.slane %v261, 0
    %v264 = vperm.slane %v261, 1
    %v267 = vrcp.pop %v263
    %v268 = vmul.f32 %v263, %v267
    %v269 = vsub.f32 1.0, %v268
    %v270 = vmul.f32 %v267, %v269
    %v271 = vadd.f32 %v267, %v270
    %vm272 = vweird.f32 %v263
    %vm273 = vweird.f32 %v267
    %vm274 = vmor %vm272, %vm273
    %v275 = vsel %vm274, %v267, %v271
    %v276 = vand.u32 2147483647, %v263
    %vm277 = vcmp.eq.f32.partialorder %v276, 8.507059e+37
    %v278 = vand.u32 %v263, 2147483648
    %v279 = vor.u32 1.1754944e-38, %v278
    %v280 = vsel %vm277, %v279, %v275
    %v281 = vmul.f32 %v228, %v280
    %v282 = vmul.f32 %v230, %v280
    %v283 = vrcp.pop %v264
    %v284 = vmul.f32 %v264, %v283
    %v285 = vsub.f32 1.0, %v284
    %v286 = vmul.f32 %v283, %v285
    %v287 = vadd.f32 %v283, %v286
    %vm288 = vweird.f32 %v264
    %vm289 = vweird.f32 %v283
    %vm290 = vmor %vm288, %vm289
    %v291 = vsel %vm290, %v283, %v287
    %v292 = vand.u32 2147483647, %v264
    %vm293 = vcmp.eq.f32.partialorder %v292, 8.507059e+37
    %v294 = vand.u32 %v264, 2147483648
    %v295 = vor.u32 1.1754944e-38, %v294
    %v296 = vsel %vm293, %v295, %v291
    %v297 = vmul.f32 %v232, %v296
    %v298 = vmul.f32 %v234, %v296
    %300 = vset.pattern.permute.xlu0 0
    %301 = vperm.xlu0 %300, %v281
    %v302 = vpop.permute.xlu0 %301
    %305 = vset.pattern.permute.xlu0 0
    %306 = vperm.xlu0 %305, %v282
    %v307 = vpop.permute.xlu0 %306
    %310 = vset.pattern.permute.xlu0 0
    %311 = vperm.xlu0 %310, %v297
    %v312 = vpop.permute.xlu0 %311
    %315 = vset.pattern.permute.xlu0 0
    %316 = vperm.xlu0 %315, %v298
    %v317 = vpop.permute.xlu0 %316
    %v319 = vmul.f32 %v75, %v302
    %v320 = vmul.f32 %v76, %v302
    %v321 = vmul.f32 %v77, %v302
    %v322 = vmul.f32 %v78, %v302
    %v323 = vmul.f32 %v79, %v302
    %v324 = vmul.f32 %v80, %v302
    %v325 = vmul.f32 %v81, %v302
    %v326 = vmul.f32 %v82, %v302
    %v327 = vmul.f32 %v83, %v307
    %v328 = vmul.f32 %v84, %v307
    %v329 = vmul.f32 %v85, %v307
    %v330 = vmul.f32 %v86, %v307
    %v331 = vmul.f32 %v87, %v307
    %v332 = vmul.f32 %v88, %v307
    %v333 = vmul.f32 %v89, %v307
    %v334 = vmul.f32 %v90, %v307
    %v335 = vmul.f32 %v91, %v312
    %v336 = vmul.f32 %v92, %v312
    %v337 = vmul.f32 %v93, %v312
    %v338 = vmul.f32 %v94, %v312
    %v339 = vmul.f32 %v95, %v312
    %v340 = vmul.f32 %v96, %v312
    %v341 = vmul.f32 %v97, %v312
    %v342 = vmul.f32 %v98, %v312
    %v343 = vmul.f32 %v99, %v317
    %v344 = vmul.f32 %v100, %v317
    %v345 = vmul.f32 %v101, %v317
    %v346 = vmul.f32 %v102, %v317
    %v347 = vmul.f32 %v103, %v317
    %v348 = vmul.f32 %v104, %v317
    %v349 = vmul.f32 %v105, %v317
    %v350 = vmul.f32 %v106, %v317
    %v351 = vadd.f32 %v319, %v327
    %v352 = vrot.slane %v351, 4
    %v353 = vadd.f32 %v351, %v352
    %v354 = vrot.slane %v353, 2
    %v355 = vadd.f32 %v353, %v354
    %v356 = vrot.slane %v355, 1
    %v357 = vadd.f32 %v355, %v356
    %v358 = vadd.f32 %v320, %v328
    %v359 = vrot.slane %v358, 4
    %v360 = vadd.f32 %v358, %v359
    %v361 = vrot.slane %v360, 2
    %v362 = vadd.f32 %v360, %v361
    %v363 = vrot.slane %v362, 1
    %v364 = vadd.f32 %v362, %v363
    %v365 = vadd.f32 %v321, %v329
    %v366 = vrot.slane %v365, 4
    %v367 = vadd.f32 %v365, %v366
    %v368 = vrot.slane %v367, 2
    %v369 = vadd.f32 %v367, %v368
    %v370 = vrot.slane %v369, 1
    %v371 = vadd.f32 %v369, %v370
    %v372 = vadd.f32 %v322, %v330
    %v373 = vrot.slane %v372, 4
    %v374 = vadd.f32 %v372, %v373
    %v375 = vrot.slane %v374, 2
    %v376 = vadd.f32 %v374, %v375
    %v377 = vrot.slane %v376, 1
    %v378 = vadd.f32 %v376, %v377
    %v379 = vadd.f32 %v323, %v331
    %v380 = vrot.slane %v379, 4
    %v381 = vadd.f32 %v379, %v380
    %v382 = vrot.slane %v381, 2
    %v383 = vadd.f32 %v381, %v382
    %v384 = vrot.slane %v383, 1
    %v385 = vadd.f32 %v383, %v384
    %v386 = vadd.f32 %v324, %v332
    %v387 = vrot.slane %v386, 4
    %v388 = vadd.f32 %v386, %v387
    %v389 = vrot.slane %v388, 2
    %v390 = vadd.f32 %v388, %v389
    %v391 = vrot.slane %v390, 1
    %v392 = vadd.f32 %v390, %v391
    %v393 = vadd.f32 %v325, %v333
    %v394 = vrot.slane %v393, 4
    %v395 = vadd.f32 %v393, %v394
    %v396 = vrot.slane %v395, 2
    %v397 = vadd.f32 %v395, %v396
    %v398 = vrot.slane %v397, 1
    %v399 = vadd.f32 %v397, %v398
    %v400 = vadd.f32 %v326, %v334
    %v401 = vrot.slane %v400, 4
    %v402 = vadd.f32 %v400, %v401
    %v403 = vrot.slane %v402, 2
    %v404 = vadd.f32 %v402, %v403
    %v405 = vrot.slane %v404, 1
    %v406 = vadd.f32 %v404, %v405
    %v407 = vadd.f32 %v335, %v343
    %v408 = vrot.slane %v407, 4
    %v409 = vadd.f32 %v407, %v408
    %v410 = vrot.slane %v409, 2
    %v411 = vadd.f32 %v409, %v410
    %v412 = vrot.slane %v411, 1
    %v413 = vadd.f32 %v411, %v412
    %v414 = vadd.f32 %v336, %v344
    %v415 = vrot.slane %v414, 4
    %v416 = vadd.f32 %v414, %v415
    %v417 = vrot.slane %v416, 2
    %v418 = vadd.f32 %v416, %v417
    %v419 = vrot.slane %v418, 1
    %v420 = vadd.f32 %v418, %v419
    %v421 = vadd.f32 %v337, %v345
    %v422 = vrot.slane %v421, 4
    %v423 = vadd.f32 %v421, %v422
    %v424 = vrot.slane %v423, 2
    %v425 = vadd.f32 %v423, %v424
    %v426 = vrot.slane %v425, 1
    %v427 = vadd.f32 %v425, %v426
    %v428 = vadd.f32 %v338, %v346
    %v429 = vrot.slane %v428, 4
    %v430 = vadd.f32 %v428, %v429
    %v431 = vrot.slane %v430, 2
    %v432 = vadd.f32 %v430, %v431
    %v433 = vrot.slane %v432, 1
    %v434 = vadd.f32 %v432, %v433
    %v435 = vadd.f32 %v339, %v347
    %v436 = vrot.slane %v435, 4
    %v437 = vadd.f32 %v435, %v436
    %v438 = vrot.slane %v437, 2
    %v439 = vadd.f32 %v437, %v438
    %v440 = vrot.slane %v439, 1
    %v441 = vadd.f32 %v439, %v440
    %v442 = vadd.f32 %v340, %v348
    %v443 = vrot.slane %v442, 4
    %v444 = vadd.f32 %v442, %v443
    %v445 = vrot.slane %v444, 2
    %v446 = vadd.f32 %v444, %v445
    %v447 = vrot.slane %v446, 1
    %v448 = vadd.f32 %v446, %v447
    %v449 = vadd.f32 %v341, %v349
    %v450 = vrot.slane %v449, 4
    %v451 = vadd.f32 %v449, %v450
    %v452 = vrot.slane %v451, 2
    %v453 = vadd.f32 %v451, %v452
    %v454 = vrot.slane %v453, 1
    %v455 = vadd.f32 %v453, %v454
    %v456 = vadd.f32 %v342, %v350
    %v457 = vrot.slane %v456, 4
    %v458 = vadd.f32 %v456, %v457
    %v459 = vrot.slane %v458, 2
    %v460 = vadd.f32 %v458, %v459
    %v461 = vrot.slane %v460, 1
    %v462 = vadd.f32 %v460, %v461
    %v463 = vld [vmem:[#allocation7] sm:$0xff]
    %v465 = vperm.slane %v463, 0
    %v466 = vperm.slane %v463, 1
    %v467 = vperm.slane %v463, 2
    %v468 = vperm.slane %v463, 3
    %v469 = vperm.slane %v463, 4
    %v470 = vperm.slane %v463, 5
    %v471 = vperm.slane %v463, 6
    %v472 = vperm.slane %v463, 7
    %v481 = vmul.f32 %v357, %v465
    %v482 = vmul.f32 %v364, %v466
    %v483 = vmul.f32 %v371, %v467
    %v484 = vmul.f32 %v378, %v468
    %v485 = vmul.f32 %v385, %v469
    %v486 = vmul.f32 %v392, %v470
    %v487 = vmul.f32 %v399, %v471
    %v488 = vmul.f32 %v406, %v472
    %v489 = vmul.f32 %v413, %v465
    %v490 = vmul.f32 %v420, %v466
    %v491 = vmul.f32 %v427, %v467
    %v492 = vmul.f32 %v434, %v468
    %v493 = vmul.f32 %v441, %v469
    %v494 = vmul.f32 %v448, %v470
    %v495 = vmul.f32 %v455, %v471
    %v496 = vmul.f32 %v462, %v472
    %v497 = vld [vmem:[#allocation8] sm:$0xff]
    %v499 = vperm.slane %v497, 0
    %v500 = vperm.slane %v497, 1
    %v501 = vperm.slane %v497, 2
    %v502 = vperm.slane %v497, 3
    %v503 = vperm.slane %v497, 4
    %v504 = vperm.slane %v497, 5
    %v505 = vperm.slane %v497, 6
    %v506 = vperm.slane %v497, 7
    %v515 = vadd.f32 %v481, %v499
    %v516 = vadd.f32 %v482, %v500
    %v517 = vadd.f32 %v483, %v501
    %v518 = vadd.f32 %v484, %v502
    %v519 = vadd.f32 %v485, %v503
    %v520 = vadd.f32 %v486, %v504
    %v521 = vadd.f32 %v487, %v505
    %v522 = vadd.f32 %v488, %v506
    %v523 = vadd.f32 %v489, %v499
    %v524 = vadd.f32 %v490, %v500
    %v525 = vadd.f32 %v491, %v501
    %v526 = vadd.f32 %v492, %v502
    %v527 = vadd.f32 %v493, %v503
    %v528 = vadd.f32 %v494, %v504
    %v529 = vadd.f32 %v495, %v505
    %v530 = vadd.f32 %v496, %v506
    %v547 = vrot.slane %v516, 6
    %v548 = vrot.slane %v517, 4
    %v549 = vrot.slane %v518, 2
    %v550 = vrot.slane %v520, 6
    %v551 = vrot.slane %v521, 4
    %v552 = vrot.slane %v522, 2
    %v553 = vrot.slane %v524, 6
    %v554 = vrot.slane %v525, 4
    %v555 = vrot.slane %v526, 2
    %v556 = vrot.slane %v528, 6
    %v557 = vrot.slane %v529, 4
    %v558 = vrot.slane %v530, 2
    %vm559 = vcmask 1041408
    %v560 = vsel %vm559, %v515, %v547
    %vm561 = vcmask 1045508
    %v562 = vsel %vm561, %v548, %v549
    %vm563 = vcmask 1043456
    %v564 = vsel %vm563, %v560, %v562
    %v565 = vsel %vm559, %v519, %v550
    %v566 = vsel %vm561, %v551, %v552
    %v567 = vsel %vm563, %v565, %v566
    %v568 = vsel %vm559, %v523, %v553
    %v569 = vsel %vm561, %v554, %v555
    %v570 = vsel %vm563, %v568, %v569
    %v571 = vsel %vm559, %v527, %v556
    %v572 = vsel %vm561, %v557, %v558
    %v573 = vsel %vm563, %v571, %v572
    %vm574 = vcmask 1044484
    %v575 = vsel %vm574, %v564, %v564
    %vm576 = vcmask 1046534
    %v577 = vsel %vm576, %v564, %v575
    %v578 = vrot.slane %v570, 7
    %v579 = vsel %vm211, %v578, %v577
    %vm580 = vcmask 1043459
    %v581 = vsel %vm580, %v578, %v579
    %vm582 = vcmask 1045509
    %v583 = vsel %vm582, %v578, %v581
    %vm584 = vcmask 1047559
    %v585 = vsel %vm584, %v578, %v583
    %v586 = vsel %vm574, %v567, %v567
    %v587 = vsel %vm576, %v567, %v586
    %v588 = vrot.slane %v573, 7
    %v589 = vsel %vm211, %v588, %v587
    %v590 = vsel %vm580, %v588, %v589
    %v591 = vsel %vm582, %v588, %v590
    %v592 = vsel %vm584, %v588, %v591
    %595 = vst [vmem:[#allocation10] sm:$0xff] %v585
    %596 = vst [vmem:[#allocation10 + $0x8] sm:$0xff] %v592
    // Predicated region
    $region34: #{tpu_custom_call.1} parent=1 // pred_check
      _
    $region35: #{tpu_custom_call.1} parent=1 // pred_check_branch
      %598 = sbr.rel (0) target = $region37
    $region36: #{tpu_custom_call.1} parent=1 // pred_region
      %600 = vsyncadd [#allocation4], 0
      %s602 = sshll.u32 [#allocation10], 4
      %s603 = int_to_ptr.vmem [resolvable:$true] %s602
      %s604 = sshll.u32 %s4, 4
      %s605 = int_to_ptr.hbm [resolvable:$true] %s604
      %607 = dma.vmem_to_hbm [thread:$0]  %s603, 256, %s605, [#allocation4]
    $region37: #{tpu_custom_call.1} parent=1 // pred_fallthru
      _
    // Predicated region
    $region38: #{tpu_custom_call.1} parent=1 // pred_check
      _
    $region39: #{tpu_custom_call.1} parent=1 // pred_check_branch
      %609 = sbr.rel (0) target = $region41
    $region40: #{tpu_custom_call.1} parent=1 // pred_region
      %611 = dma.done [#allocation4], 256
    $region41: #{tpu_custom_call.1} parent=1 // pred_fallthru
      _
    %612 = vsyncpa [#allocation3], 1
    %613 = vsyncpa [#allocation6], 1
    %614 = vsyncpa [#allocation9], 1
    %615 = vsyncpa [#allocation4], 1

</llo_original>
